<compile_context>
chip_gen: v7x
topology: tpu7x:2x2x1
jax: 0.10.0
libtpu: 0.0.40
codegen_flags: <defaults>
</compile_context>

<pallas_src>
import functools

import jax
import jax.numpy as jnp
from jax.experimental import pallas as pl
from jax.experimental.pallas import tpu as pltpu


# ----------------------------- tiling constants -------------------------------

_TT = 512          # tgt tile for dot/general score kernels
_TS = 512          # src tile for dot/general score kernels
_TK = 512          # contraction tile when the feature dim is split
_D_SPLIT = 1536    # single contraction step up to this feature size
_FUSE_D_MAX = 512  # fuse linear_in into the score kernel when Dq,Dk <= this
_PROJ_TL = 512     # row tile in _project
_PROJ_TD = 512     # weight output-column tile in _project
_MLP_TT = 128      # tgt tile for the mlp score kernel (fixed, Dk-independent)
_MLP_TS = 128      # src tile for the mlp score kernel
_MLP_TDK = 128     # Dk chunk width inside the mlp kernel (bounds the temp)
_VMEM_LIMIT = 32 * 1024 * 1024   # > v5e 16 MiB default, <= v7x physical VMEM

_MXU_DTYPE = jnp.bfloat16   # MXU operand dtype (accumulation stays f32)
_MLP_DTYPE = jnp.bfloat16   # mlp add/tanh/mul dtype (set jnp.float32 for
                            # strict f32 parity, e.g. on pre-bf16-VPU parts)


def _tile(n, max_tile):
    """Full-dim block when small (always layout-legal); otherwise a fixed
    128-multiple tile with a pl.cdiv grid (partial last block, no padding)."""
    return n if n <= max_tile else max_tile


# ----------------------------- kernels ----------------------------------------

def _dot_score_kernel(a_ref, b_ref, o_ref):
    """scores tile = a_tile @ b_tile^T  (single contraction step)."""
    o_ref[0] = jax.lax.dot_general(
        a_ref[0], b_ref[0], (((1,), (1,)), ((), ())),
        preferred_element_type=jnp.float32)


def _dot_score_acc_kernel(a_ref, b_ref, o_ref):
    """Split-K variant: accumulate directly into the VMEM-resident output
    block (its index_map ignores k) — no scratch, no zero-fill."""
    part = jax.lax.dot_general(
        a_ref[0], b_ref[0], (((1,), (1,)), ((), ())),
        preferred_element_type=jnp.float32)
    k = pl.program_id(3)

    @pl.when(k == 0)
    def _first():
        o_ref[0] = part

    @pl.when(k > 0)
    def _rest():
        o_ref[0] += part


def _general_fused_kernel(a_ref, w_ref, b_ref, o_ref):
    """scores tile = (a_tile @ W^T) @ b_tile^T with W (torch (Dk,Dq) layout)
    held resident in VMEM (constant-index BlockSpec)."""
    ap = jax.lax.dot_general(
        a_ref[0], w_ref[...], (((1,), (1,)), ((), ())),
        preferred_element_type=jnp.float32)                     # (tT, Dk) f32
    o_ref[0] = jax.lax.dot_general(
        ap.astype(_MXU_DTYPE), b_ref[0], (((1,), (1,)), ((), ())),
        preferred_element_type=jnp.float32)


def _proj_kernel(x_ref, w_ref, o_ref, *, w_dim):
    """y = x @ W^T (w_dim=1, torch nn.Linear layout) or y = x @ W (w_dim=0)."""
    y = jax.lax.dot_general(
        x_ref[0].astype(_MXU_DTYPE), w_ref[...], (((1,), (w_dim,)), ((), ())),
        preferred_element_type=jnp.float32)
    o_ref[0] = y.astype(o_ref.dtype)


def _proj_bias_kernel(x_ref, w_ref, b_ref, o_ref, *, w_dim):
    y = jax.lax.dot_general(
        x_ref[0].astype(_MXU_DTYPE), w_ref[...], (((1,), (w_dim,)), ((), ())),
        preferred_element_type=jnp.float32)
    o_ref[0] = (y + b_ref[...]).astype(o_ref.dtype)


def _mlp_score_kernel(wq_ref, uh_ref, v_ref, o_ref):
    """score[t,s] = sum_d tanh(wq[t,d] + uh[s,d]) * v[d]; Dk chunked in-kernel
    so the (tT, tS, chunk) temp is bounded; bf16 add/tanh/mul, f32 reduce."""
    dk = wq_ref.shape[-1]
    acc = jnp.zeros(o_ref.shape[1:], jnp.float32)
    for lo in range(0, dk, _MLP_TDK):           # static unroll, few chunks
        hi = min(lo + _MLP_TDK, dk)
        wq = wq_ref[0, :, lo:hi]                # (tT, c)  (_MLP_DTYPE)
        uh = uh_ref[0, :, lo:hi]                # (tS, c)
        vc = v_ref[:, lo:hi]                    # (1, c)
        z = jnp.tanh(wq[:, None, :] + uh[None, :, :])      # (tT, tS, c)
        acc = acc + jnp.sum((z * vc[None, :, :]).astype(jnp.float32), axis=-1)
    o_ref[0] = acc.astype(o_ref.dtype)


# ----------------------------- tiled pallas wrappers --------------------------

def _dot_scores(ht_like, hs_like):
    """scores[b,t,s] = sum_d ht[b,t,d] * hs[b,s,d]  (tiled bmm, bf16 MXU)."""
    B, T, D = ht_like.shape
    _, S, _ = hs_like.shape
    a = ht_like.astype(_MXU_DTYPE)
    b = hs_like.astype(_MXU_DTYPE)
    tT = _tile(T, _TT)
    tS = _tile(S, _TS)

    cost = pl.CostEstimate(
        flops=int(2 * B * T * S * D), transcendentals=0,
        bytes_accessed=int(2 * B * D * (T + S) + 4 * B * T * S))

    if D <= _D_SPLIT:
        return pl.pallas_call(
            _dot_score_kernel,
            out_shape=jax.ShapeDtypeStruct((B, T, S), jnp.float32),
            grid=(B, pl.cdiv(T, tT), pl.cdiv(S, tS)),
            in_specs=[
                pl.BlockSpec((1, tT, D), lambda bb, i, j: (bb, i, 0)),
                pl.BlockSpec((1, tS, D), lambda bb, i, j: (bb, j, 0)),
            ],
            out_specs=pl.BlockSpec((1, tT, tS), lambda bb, i, j: (bb, i, j)),
            compiler_params=pltpu.CompilerParams(
                dimension_semantics=("parallel", "parallel", "parallel"),
                vmem_limit_bytes=_VMEM_LIMIT),
            cost_estimate=cost,
        )(a, b)

    # Large feature dim: split the contraction over a trailing grid axis.
    # Only D genuinely needs zero padding (garbage there corrupts results).
    tK = _TK
    d_pad = ((D + tK - 1) // tK) * tK
    if d_pad != D:
        a = jnp.pad(a, ((0, 0), (0, 0), (0, d_pad - D)))
        b = jnp.pad(b, ((0, 0), (0, 0), (0, d_pad - D)))
    return pl.pallas_call(
        _dot_score_acc_kernel,
        out_shape=jax.ShapeDtypeStruct((B, T, S), jnp.float32),
        grid=(B, pl.cdiv(T, tT), pl.cdiv(S, tS), d_pad // tK),
        in_specs=[
            pl.BlockSpec((1, tT, tK), lambda bb, i, j, k: (bb, i, k)),
            pl.BlockSpec((1, tS, tK), lambda bb, i, j, k: (bb, j, k)),
        ],
        out_specs=pl.BlockSpec((1, tT, tS), lambda bb, i, j, k: (bb, i, j)),
        compiler_params=pltpu.CompilerParams(
            dimension_semantics=("parallel", "parallel", "parallel",
                                 "arbitrary"),
            vmem_limit_bytes=_VMEM_LIMIT),
        cost_estimate=cost,
    )(a, b)


def _general_fused(h_t, h_s, w):
    """'general' scores with linear_in fused into the score kernel (small D)."""
    B, T, Dq = h_t.shape
    _, S, Dk = h_s.shape
    a = h_t.astype(_MXU_DTYPE)
    b = h_s.astype(_MXU_DTYPE)
    wb = w.astype(_MXU_DTYPE)                   # torch layout (Dk, Dq)
    tT = _tile(T, _TT)
    tS = _tile(S, _TS)
    cost = pl.CostEstimate(
        flops=int(2 * B * T * S * Dk + 2 * B * T * pl.cdiv(S, tS) * Dq * Dk),
        transcendentals=0,
        bytes_accessed=int(2 * (B * T * Dq + B * S * Dk + Dq * Dk)
                           + 4 * B * T * S))
    return pl.pallas_call(
        _general_fused_kernel,
        out_shape=jax.ShapeDtypeStruct((B, T, S), jnp.float32),
        grid=(B, pl.cdiv(T, tT), pl.cdiv(S, tS)),
        in_specs=[
            pl.BlockSpec((1, tT, Dq), lambda bb, i, j: (bb, i, 0)),
            pl.BlockSpec((Dk, Dq), lambda bb, i, j: (0, 0)),   # resident weight
            pl.BlockSpec((1, tS, Dk), lambda bb, i, j: (bb, j, 0)),
        ],
        out_specs=pl.BlockSpec((1, tT, tS), lambda bb, i, j: (bb, i, j)),
        compiler_params=pltpu.CompilerParams(
            dimension_semantics=("parallel", "parallel", "parallel"),
            vmem_limit_bytes=_VMEM_LIMIT),
        cost_estimate=cost,
    )(a, wb, b)


def _project(x, w, bias=None, *, w_contract_dim=1, out_dtype=jnp.float32):
    """Tiled linear: y = x @ W^T (+bias) if w_contract_dim==1 (torch layout),
    else y = x @ W.  The weight is tiled along its output columns so the
    resident VMEM slab is bounded even for large Dout (v7x-safe)."""
    B, L, Din = x.shape
    Dout = w.shape[1 - w_contract_dim]
    wb = w.astype(_MXU_DTYPE)
    tL = _tile(L, _PROJ_TL)
    tD = _tile(Dout, _PROJ_TD)

    if w_contract_dim == 1:                     # W is (Dout, Din)
        w_spec = pl.BlockSpec((tD, Din), lambda bb, i, o: (o, 0))
    else:                                       # W is (Din, Dout)
        w_spec = pl.BlockSpec((Din, tD), lambda bb, i, o: (0, o))

    in_specs = [pl.BlockSpec((1, tL, Din), lambda bb, i, o: (bb, i, 0)), w_spec]
    args = [x, wb]
    if bias is not None:
        in_specs.append(pl.BlockSpec((1, tD), lambda bb, i, o: (0, o)))
        args.append(bias.reshape(1, Dout).astype(jnp.float32))
        kern = functools.partial(_proj_bias_kernel, w_dim=w_contract_dim)
    else:
        kern = functools.partial(_proj_kernel, w_dim=w_contract_dim)

    return pl.pallas_call(
        kern,
        out_shape=jax.ShapeDtypeStruct((B, L, Dout), out_dtype),
        grid=(B, pl.cdiv(L, tL), pl.cdiv(Dout, tD)),
        in_specs=in_specs,
        out_specs=pl.BlockSpec((1, tL, tD), lambda bb, i, o: (bb, i, o)),
        compiler_params=pltpu.CompilerParams(
            dimension_semantics=("parallel", "parallel", "parallel"),
            vmem_limit_bytes=_VMEM_LIMIT),
    )(*args)


def _mlp_scores(wq, uh, v):
    B, T, Dk = wq.shape
    _, S, _ = uh.shape
    tT = _tile(T, _MLP_TT)
    tS = _tile(S, _MLP_TS)
    vb = v.astype(_MLP_DTYPE)                   # (1, Dk)
    cost = pl.CostEstimate(
        flops=int(3 * B * T * S * Dk),
        transcendentals=int(B * T * S * Dk),
        bytes_accessed=int(2 * B * Dk * (T + S) + 4 * B * T * S))
    return pl.pallas_call(
        _mlp_score_kernel,
        out_shape=jax.ShapeDtypeStruct((B, T, S), jnp.float32),
        grid=(B, pl.cdiv(T, tT), pl.cdiv(S, tS)),
        in_specs=[
            pl.BlockSpec((1, tT, Dk), lambda bb, i, j: (bb, i, 0)),
            pl.BlockSpec((1, tS, Dk), lambda bb, i, j: (bb, j, 0)),
            pl.BlockSpec((1, Dk), lambda bb, i, j: (0, 0)),
        ],
        out_specs=pl.BlockSpec((1, tT, tS), lambda bb, i, j: (bb, i, j)),
        compiler_params=pltpu.CompilerParams(
            dimension_semantics=("parallel", "parallel", "parallel"),
            vmem_limit_bytes=_VMEM_LIMIT),
        cost_estimate=cost,
    )(wq, uh, vb)


# ----------------------------- public wrapper ---------------------------------

def attention_scorer(h_t, h_s, params, attn_type):
    """Pallas implementation of AttentionScorer.forward."""
    B, T, Dq = h_t.shape
    Bs, S, Dk = h_s.shape
    assert B == Bs, "aeq(src_batch, tgt_batch)"

    if attn_type == "dot":
        assert Dq == Dk, "dot attention requires dim_query == dim_key"
        return _dot_scores(h_t, h_s)

    if attn_type == "general":
        w = params["linear_in_w"]                       # torch layout (Dk, Dq)
        if Dq <= _FUSE_D_MAX and Dk <= _FUSE_D_MAX:
            # Fused: weight resident in VMEM, no HBM round-trip of h_t W^T.
            return _general_fused(h_t, h_s, w)
        # Large feature dims: project the *shorter* sequence, then bmm.
        #   (h_t W^T) h_s^T == h_t (h_s W)^T
        if T <= S:
            return _dot_scores(
                _project(h_t, w, w_contract_dim=1, out_dtype=_MXU_DTYPE), h_s)
        return _dot_scores(
            h_t, _project(h_s, w, w_contract_dim=0, out_dtype=_MXU_DTYPE))

    if attn_type == "mlp":
        # Hoisted projections (computed once per row, not per (T,S) tile pair);
        # emitted in bf16 to halve HBM traffic into the score kernel.
        wq = _project(h_t, params["linear_query_w"],
                      bias=params["linear_query_b"],
                      w_contract_dim=1, out_dtype=_MLP_DTYPE)
        uh = _project(h_s, params["linear_context_w"],
                      w_contract_dim=1, out_dtype=_MLP_DTYPE)
        return _mlp_scores(wq, uh, params["v_w"])

    raise ValueError(f"unknown attn_type {attn_type}")


# ----------------------------- reference (plain JAX) --------------------------

def attention_scorer_ref(h_t, h_s, params, attn_type):
    if attn_type == "dot":
        return jnp.einsum("btd,bsd->bts", h_t, h_s)
    if attn_type == "general":
        ht = h_t @ params["linear_in_w"].T
        return jnp.einsum("btd,bsd->bts", ht, h_s)
    wq = h_t @ params["linear_query_w"].T + params["linear_query_b"]
    uh = h_s @ params["linear_context_w"].T
    wquh = jnp.tanh(wq[:, :, None, :] + uh[:, None, :, :])
    return jnp.einsum("btsd,d->bts", wquh, params["v_w"][0])


# ----------------------------- main -------------------------------------------

if __name__ == "__main__":
    B, Dq, Dk = 2, 32, 32
    key = jax.random.PRNGKey(0)
    k_in, k_w1, k_w2, k_b2, k_w3, k_v = jax.random.split(key, 6)

    # Deterministic synthetic parameters (torch.nn.Linear layout: (out, in)).
    params = {
        "linear_in_w":      0.1 * jax.random.normal(k_w1, (Dk, Dq), jnp.float32),
        "linear_query_w":   0.1 * jax.random.normal(k_w2, (Dk, Dq), jnp.float32),
        "linear_query_b":   0.1 * jax.random.normal(k_b2, (Dk,), jnp.float32),
        "linear_context_w": 0.1 * jax.random.normal(k_w3, (Dk, Dk), jnp.float32),
        # torch Linear(dim_key, 1).weight has shape (1, dim_key)
        "v_w":              0.1 * jax.random.normal(k_v, (1, Dk), jnp.float32),
    }
    # Note: the original PyTorch 'mlp' branch references an undefined `dim`
    # variable in `wquh.view(-1, dim)`; semantically it is dim_key, which is
    # what we implement here.

    ok = True
    # (T, S) = (8, 8) and (16, 8): the second exercises non-square T/S tiling.
    for cfg_idx, (T, S) in enumerate([(8, 8), (16, 8)]):
        k_ht, k_hs = jax.random.split(jax.random.fold_in(k_in, cfg_idx))
        h_t = 0.5 * jax.random.normal(k_ht, (B, T, Dq), jnp.float32)
        h_s = 0.5 * jax.random.normal(k_hs, (B, S, Dk), jnp.float32)
        for attn_type in ("dot", "general", "mlp"):
            out = attention_scorer(h_t, h_s, params, attn_type)
            out = jax.block_until_ready(out)
            ref = attention_scorer_ref(h_t, h_s, params, attn_type)
            if out.shape != (B, T, S):
                ok = False
                print("shape mismatch", attn_type, out.shape)
            # Tolerances sized for bf16 MXU / VPU operands with f32 accumulation.
            if not jnp.allclose(out, ref, rtol=5e-2, atol=5e-2):
                ok = False
                print("value mismatch", attn_type,
                      float(jnp.max(jnp.abs(out - ref))))

    if ok:
        print("KERNEL_OK")
</pallas_src>

<mosaic_0001>
module attributes {stable_mosaic.version = 11 : i64} {
  func.func @_dot_score_kernel(%arg0: i32, %arg1: i32, %arg2: i32, %arg3: memref<1x8x32xbf16, #tpu.memory_space<vmem>>, %arg4: memref<1x8x32xbf16, #tpu.memory_space<vmem>>, %arg5: memref<1x8x8xf32, #tpu.memory_space<vmem>>) attributes {dimension_semantics = [#tpu.dimension_semantics<parallel>, #tpu.dimension_semantics<parallel>, #tpu.dimension_semantics<parallel>], iteration_bounds = array<i64: 2, 1, 1>, scalar_prefetch = 0 : i64, scratch_operands = 0 : i64, tpu.core_type = #tpu.core_type<tc>, window_params = [{transform_indices = @transform_0, window_bounds = array<i64: 1, 8, 32>}, {transform_indices = @transform_1, window_bounds = array<i64: 1, 8, 32>}, {transform_indices = @transform_2, window_bounds = array<i64: 1, 8, 8>}]} {
    %c0 = arith.constant 0 : index
    %c0_0 = arith.constant 0 : index
    %c0_1 = arith.constant 0 : index
    %0 = vector.load %arg3[%c0, %c0_0, %c0_1] : memref<1x8x32xbf16, #tpu.memory_space<vmem>>, vector<1x8x32xbf16>
    %1 = vector.shape_cast %0 : vector<1x8x32xbf16> to vector<8x32xbf16>
    %c0_2 = arith.constant 0 : index
    %c0_3 = arith.constant 0 : index
    %c0_4 = arith.constant 0 : index
    %2 = vector.load %arg4[%c0_2, %c0_3, %c0_4] : memref<1x8x32xbf16, #tpu.memory_space<vmem>>, vector<1x8x32xbf16>
    %3 = vector.shape_cast %2 : vector<1x8x32xbf16> to vector<8x32xbf16>
    %cst = arith.constant dense<0.000000e+00> : vector<8x8xf32>
    %4 = tpu.matmul %1, %3, %cst {dimension_numbers = #tpu.dot_dimension_numbers<[1], [1], [0], [0], [0, 0, 1, 0], [], []>} : vector<8x32xbf16>, vector<8x32xbf16>, vector<8x8xf32> -> vector<8x8xf32>
    %c0_5 = arith.constant 0 : index
    %c0_6 = arith.constant 0 : index
    %c0_7 = arith.constant 0 : index
    %5 = vector.load %arg5[%c0_5, %c0_6, %c0_7] : memref<1x8x8xf32, #tpu.memory_space<vmem>>, vector<1x8x8xf32>
    %6 = vector.shape_cast %5 : vector<1x8x8xf32> to vector<8x8xf32>
    %7 = vector.shape_cast %4 : vector<8x8xf32> to vector<1x8x8xf32>
    tpu.vector_store %arg5[%c0_5, %c0_6, %c0_7], %7 {strides = array<i32>} : memref<1x8x8xf32, #tpu.memory_space<vmem>>, vector<1x8x8xf32>,
    return
  }
  func.func @transform_0(%arg0: i32, %arg1: i32, %arg2: i32) -> (i32, i32, i32) {
    %c0_i32 = arith.constant 0 : i32
    %c0_i32_0 = arith.constant 0 : i32
    return %arg0, %arg1, %c0_i32 : i32, i32, i32
  }
  func.func @transform_1(%arg0: i32, %arg1: i32, %arg2: i32) -> (i32, i32, i32) {
    %c0_i32 = arith.constant 0 : i32
    %c0_i32_0 = arith.constant 0 : i32
    return %arg0, %arg2, %c0_i32 : i32, i32, i32
  }
  func.func @transform_2(%arg0: i32, %arg1: i32, %arg2: i32) -> (i32, i32, i32) {
    %c0_i32 = arith.constant 0 : i32
    return %arg0, %arg1, %arg2 : i32, i32, i32
  }
}

</mosaic_0001>

<llo_original>
// kernel: tpu_custom_call.1
$region0: #{tpu_custom_call.1}
  #allocation0 [shape = 'u32[]', space=smem, size = 0x4, offset = 0x4, fixed_abs, tag = 'smem constant byte address 0x4 - core index']
  #allocation1 [shape = 'u32[144,128]{1,0:T(1,128)}', space=vmem, size = 0x12000, scoped, tag = 'internal scratch']
  %s0 = inlined_call_operand.hbm [shape: bf16[2,8,32], index: 0, kind: input, shape index: {}]
  %s1 = inlined_call_operand.hbm [shape: bf16[2,8,32], index: 1, kind: input, shape index: {}]
  %s2 = inlined_call_operand.hbm [shape: f32[2,8,8], index: 2, kind: output, shape index: {}]
  %s3 = sld [smem:[#allocation0]]
  $region49: #{tpu_custom_call.1} parent=0
    _
  %s5 = ssub.s32 1, %s3
  %s6 = scalar_select 0, %s5, %s3
  $region1: #{tpu_custom_call.1} parent=0
    #allocation2 [shape = 'u8[4096]{0}', space=vmem, size = 0x1000, scoped, tag = 'input window, operand 0']
    #allocation3 [shape = 's32[2]{0}', space=sflag, size = 0x8, scoped, tag = 'scoped memory for tpu_custom_call.1']
    #allocation4 [shape = 's32[2]{0}', space=sflag, size = 0x8, scoped, tag = 'scoped memory for tpu_custom_call.1']
    #allocation5 [shape = 'u8[4096]{0}', space=vmem, size = 0x1000, scoped, tag = 'input window, operand 1']
    #allocation6 [shape = 's32[2]{0}', space=sflag, size = 0x8, scoped, tag = 'scoped memory for tpu_custom_call.1']
    #allocation7 [shape = 'u8[8192]{0}', space=vmem, size = 0x2000, scoped, tag = 'output window, operand 0']
    %7 = vsyncpa [#allocation3], 0
    %s8 = scalar_lea.sflag [#allocation3], 1
    %9 = vsyncpa %s8, 0
    %10 = vsyncpa [#allocation6], 0
    %s11 = scalar_lea.sflag [#allocation6], 1
    %12 = vsyncpa %s11, 0
    %13 = vsyncpa [#allocation4], 0
    %s14 = scalar_lea.sflag [#allocation4], 1
    %15 = vsyncpa %s14, 0
    loop: start=0, step=1, limit=4
    $region2: #{tpu_custom_call.1} parent=1 // loop_pre_header
      _
    $region3: #{tpu_custom_call.1} parent=1 // loop_header
      %s17 = sphi 0, %s21
      %p18 = scmp.ge.s32.totalorder %s17, 4
      %s24 = sphi 0, %s43
      %s25 = sphi 0, %s39
      %s26 = sphi 0, %s35
      %s27 = sphi 0, %s24
      %s28 = sphi 0, %s25
      %s29 = sphi 0, %s26
      %s30 = sphi 0, %s27
      %s31 = sphi 0, %s28
      %s32 = sphi 0, %s29
      %s48 = sphi 0, %s50
      %s51 = sphi 0, %s48
      %s52 = sphi 0, %s51
      %s68 = sphi 0, %s52
      %s76 = sphi 0, %s78
      %s79 = sphi 0, %s76
      %s80 = sphi 0, %s79
      %s96 = sphi 0, %s80
      %s106 = sphi 0, %s108
      %s109 = sphi 0, %s106
      %s110 = sphi 0, %s109
      %s126 = sphi 0, %s110
    $region4: #{tpu_custom_call.1} parent=1 // loop_header_branch
      %20 = sbr.rel (%p18) target = $region8
    $region5: #{tpu_custom_call.1} parent=1 // loop_body
      %s22 = ssub.s32 %s17, 1
      %s23 = ssub.s32 %s17, 2
      %s33 = sadd.s32 1, %s26
      %p34 = scmp.ge.s32.totalorder %s33, 1
      %s35 = scalar_select %p34, 0, %s33
      %s36 = sadd.s32 1, %s25
      %s37 = scalar_select %p34, %s36, %s25
      %p38 = scmp.ge.s32.totalorder %s37, 1
      %s39 = scalar_select %p38, 0, %s37
      %s40 = sadd.s32 1, %s24
      %s41 = scalar_select %p38, %s40, %s24
      %p42 = scmp.ge.s32.totalorder %s41, 2
      %s43 = scalar_select %p42, 0, %s41
      %s44 = ssub.s32 %s24, %s43
      %s45 = ssub.s32 %s25, %s39
      %s46 = sor.u32 %s44, %s45
      %p47 = scmp.eq.s32.totalorder %s46, 0
      %s49 = sadd.s32 %s48, 1
      %s50 = scalar_select %p47, %s48, %s49
      %p53 = pneg %p47
      %p54 = scmp.eq.s32.totalorder %s17, 1
      %p55 = por %p53, %p54
      %p56 = scmp.ne.s32.totalorder %s48, %s51
      %p57 = scmp.eq.s32.totalorder %s17, 0
      %p58 = por %p56, %p57
      %p59 = scmp.ne.s32.totalorder %s48, %s51
      %p60 = scmp.eq.s32.totalorder %s22, 1
      %p61 = por %p59, %p60
      %p62 = scmp.ne.s32.totalorder %s51, %s52
      %p63 = scmp.eq.s32.totalorder %s22, 0
      %p64 = por %p62, %p63
      %p65 = scmp.ne.s32.totalorder %s51, %s52
      %p66 = scmp.eq.s32.totalorder %s23, 1
      %p67 = por %p65, %p66
      %p69 = scmp.ne.s32.totalorder %s52, %s68
      %p70 = scmp.eq.s32.totalorder %s23, 0
      %p71 = por %p69, %p70
      %s72 = ssub.s32 %s24, %s43
      %s73 = ssub.s32 %s26, %s35
      %s74 = sor.u32 %s72, %s73
      %p75 = scmp.eq.s32.totalorder %s74, 0
      %s77 = sadd.s32 %s76, 1
      %s78 = scalar_select %p75, %s76, %s77
      %p81 = pneg %p75
      %p82 = scmp.eq.s32.totalorder %s17, 1
      %p83 = por %p81, %p82
      %p84 = scmp.ne.s32.totalorder %s76, %s79
      %p85 = scmp.eq.s32.totalorder %s17, 0
      %p86 = por %p84, %p85
      %p87 = scmp.ne.s32.totalorder %s76, %s79
      %p88 = scmp.eq.s32.totalorder %s22, 1
      %p89 = por %p87, %p88
      %p90 = scmp.ne.s32.totalorder %s79, %s80
      %p91 = scmp.eq.s32.totalorder %s22, 0
      %p92 = por %p90, %p91
      %p93 = scmp.ne.s32.totalorder %s79, %s80
      %p94 = scmp.eq.s32.totalorder %s23, 1
      %p95 = por %p93, %p94
      %p97 = scmp.ne.s32.totalorder %s80, %s96
      %p98 = scmp.eq.s32.totalorder %s23, 0
      %p99 = por %p97, %p98
      %s100 = ssub.s32 %s24, %s43
      %s101 = ssub.s32 %s25, %s39
      %s102 = sor.u32 %s100, %s101
      %s103 = ssub.s32 %s26, %s35
      %s104 = sor.u32 %s102, %s103
      %p105 = scmp.eq.s32.totalorder %s104, 0
      %s107 = sadd.s32 %s106, 1
      %s108 = scalar_select %p105, %s106, %s107
      %p111 = pneg %p105
      %p112 = scmp.eq.s32.totalorder %s17, 1
      %p113 = por %p111, %p112
      %p114 = scmp.ne.s32.totalorder %s106, %s109
      %p115 = scmp.eq.s32.totalorder %s17, 0
      %p116 = por %p114, %p115
      %p117 = scmp.ne.s32.totalorder %s106, %s109
      %p118 = scmp.eq.s32.totalorder %s22, 1
      %p119 = por %p117, %p118
      %p120 = scmp.ne.s32.totalorder %s109, %s110
      %p121 = scmp.eq.s32.totalorder %s22, 0
      %p122 = por %p120, %p121
      %p123 = scmp.ne.s32.totalorder %s109, %s110
      %p124 = scmp.eq.s32.totalorder %s23, 1
      %p125 = por %p123, %p124
      %p127 = scmp.ne.s32.totalorder %s110, %s126
      %p128 = scmp.eq.s32.totalorder %s23, 0
      %p129 = por %p127, %p128
      %p130 = scmp.le.s32.totalorder 1, %s17
      %p131 = scmp.lt.s32.totalorder %s17, 3
      %p132 = pnand %p130, %p131
      %p133 = pneg %p132
      // Predicated region
      $region9: #{tpu_custom_call.1} parent=5 // pred_check
        _
      $region10: #{tpu_custom_call.1} parent=5 // pred_check_branch
        %135 = sbr.rel (%p132) target = $region12
      $region11: #{tpu_custom_call.1} parent=5 // pred_region
        %s136 = ssub.s32 %s17, 1
      $region12: #{tpu_custom_call.1} parent=5 // pred_fallthru
        _
      %p137 = scmp.lt.s32.totalorder %s17, 2
      // Predicated region
      $region13: #{tpu_custom_call.1} parent=5 // pred_check
        %p138 = pneg %p137
      $region14: #{tpu_custom_call.1} parent=5 // pred_check_branch
        %140 = sbr.rel (%p138) target = $region16
      $region15: #{tpu_custom_call.1} parent=5 // pred_region
        // Predicated region
        $region17: #{tpu_custom_call.1} parent=15 // pred_check
          %p141 = pneg %p58
        $region18: #{tpu_custom_call.1} parent=15 // pred_check_branch
          %143 = sbr.rel (%p141) target = $region20
        $region19: #{tpu_custom_call.1} parent=15 // pred_region
          %s144 = sand.u32 %s48, 1
          %s145 = scalar_lea.sflag [#allocation3], %s144
          %s146 = sand.u32 %s48, 1
          %s147 = smul.addr %s146, 4
          %s148 = scalar_lea.vmem [#allocation2], %s147
          %s150 = ssub.s32 64, 64
          %151 = vsyncadd %s145, %s150
          %s152 = sadd.s32 %s25, %s24
          %s153 = smul.addr %s152, 64
          %s154 = scalar_lea.hbm %s0, %s153
          %s156 = sshll.u32 %s148, 4
          %s157 = int_to_ptr.vmem [resolvable:$true] %s156
          %159 = dma.hbm_to_vmem [thread:$0]  %s154, 64, %s157, %s145
        $region20: #{tpu_custom_call.1} parent=15 // pred_fallthru
          _
        // Predicated region
        $region21: #{tpu_custom_call.1} parent=15 // pred_check
          %p160 = pneg %p86
        $region22: #{tpu_custom_call.1} parent=15 // pred_check_branch
          %162 = sbr.rel (%p160) target = $region24
        $region23: #{tpu_custom_call.1} parent=15 // pred_region
          %s163 = sand.u32 %s76, 1
          %s164 = scalar_lea.sflag [#allocation6], %s163
          %s165 = sand.u32 %s76, 1
          %s166 = smul.addr %s165, 4
          %s167 = scalar_lea.vmem [#allocation5], %s166
          %s169 = ssub.s32 64, 64
          %170 = vsyncadd %s164, %s169
          %s171 = sadd.s32 %s26, %s24
          %s172 = smul.addr %s171, 64
          %s173 = scalar_lea.hbm %s1, %s172
          %s175 = sshll.u32 %s167, 4
          %s176 = int_to_ptr.vmem [resolvable:$true] %s175
          %178 = dma.hbm_to_vmem [thread:$0]  %s173, 64, %s176, %s164
        $region24: #{tpu_custom_call.1} parent=15 // pred_fallthru
          _
      $region16: #{tpu_custom_call.1} parent=5 // pred_fallthru
        _
      %p179 = scmp.le.s32.totalorder 1, %s17
      %p180 = scmp.lt.s32.totalorder %s17, 3
      %p181 = pnand %p179, %p180
      %p182 = pneg %p181
      // Predicated region
      $region25: #{tpu_custom_call.1} parent=5 // pred_check
        _
      $region26: #{tpu_custom_call.1} parent=5 // pred_check_branch
        %184 = sbr.rel (%p181) target = $region28
      $region27: #{tpu_custom_call.1} parent=5 // pred_region
        %s185 = ssub.s32 %s17, 1
        %s186 = sand.u32 %s51, 1
        %s187 = scalar_lea.sflag [#allocation3], %s186
        %s188 = sand.u32 %s51, 1
        %s189 = smul.addr %s188, 4
        %s190 = scalar_lea.vmem [#allocation2], %s189
        // Predicated region
        $region29: #{tpu_custom_call.1} parent=27 // pred_check
          %p191 = pneg %p64
        $region30: #{tpu_custom_call.1} parent=27 // pred_check_branch
          %193 = sbr.rel (%p191) target = $region32
        $region31: #{tpu_custom_call.1} parent=27 // pred_region
          %194 = dma.done %s187, 64
        $region32: #{tpu_custom_call.1} parent=27 // pred_fallthru
          _
        %s195 = sand.u32 %s79, 1
        %s196 = scalar_lea.sflag [#allocation6], %s195
        %s197 = sand.u32 %s79, 1
        %s198 = smul.addr %s197, 4
        %s199 = scalar_lea.vmem [#allocation5], %s198
        // Predicated region
        $region33: #{tpu_custom_call.1} parent=27 // pred_check
          %p200 = pneg %p92
        $region34: #{tpu_custom_call.1} parent=27 // pred_check_branch
          %202 = sbr.rel (%p200) target = $region36
        $region35: #{tpu_custom_call.1} parent=27 // pred_region
          %203 = dma.done %s196, 64
        $region36: #{tpu_custom_call.1} parent=27 // pred_fallthru
          _
        %s204 = sand.u32 %s51, 1
        %s205 = scalar_lea.sflag [#allocation3], %s204
        %s206 = sand.u32 %s51, 1
        %s207 = smul.addr %s206, 4
        %s208 = scalar_lea.vmem [#allocation2], %s207
        %p209 = pneg %p64
        %p210 = pneg %p61
        %s211 = sand.u32 %s79, 1
        %s212 = scalar_lea.sflag [#allocation6], %s211
        %s213 = sand.u32 %s79, 1
        %s214 = smul.addr %s213, 4
        %s215 = scalar_lea.vmem [#allocation5], %s214
        %p216 = pneg %p92
        %p217 = pneg %p89
        %p218 = pneg %p122
        %p219 = pneg %p119
        %s220 = sand.u32 %s109, 1
        %s221 = scalar_lea.sflag [#allocation4], %s220
        %s222 = sand.u32 %s109, 1
        %s223 = smul.addr %s222, 8
        %s224 = scalar_lea.vmem [#allocation7], %s223
        %v226 = vld [vmem:[%s190] sm:$0xf]
        %v227 = vld [vmem:[%s199] sm:$0xf]
        %vm228 = vcmask 261120
        %v230 = vsel %vm228, %v226, 0
        %v233 = vsel %vm228, %v227, 0
        %235 = vmatprep.subr.bf16.mxu0 0
        %236 = vmatpush1.bf16.xpose.msra.mxu0 %v233
        %237 = vmatprep.subr.bf16.mxu0 0
        %238 = vmatpush1.bf16.xpose.msra.mxu0 0
        %239 = vmatprep.subr.bf16.mxu0 0
        %240 = vmatpush1.bf16.xpose.msra.mxu0 0
        %241 = vmatprep.subr.bf16.mxu0 0
        %242 = vmatpush1.bf16.xpose.msra.mxu0 0
        %243 = vmatprep.subr.bf16.mxu0 0
        %244 = vmatpush1.bf16.xpose.msra.mxu0 0
        %245 = vmatprep.subr.bf16.mxu0 0
        %246 = vmatpush1.bf16.xpose.msra.mxu0 0
        %247 = vmatprep.subr.bf16.mxu0 0
        %248 = vmatpush1.bf16.xpose.msra.mxu0 0
        %249 = vmatprep.subr.bf16.mxu0 0
        %250 = vmatpush1.bf16.xpose.msra.mxu0 0
        %251 = vmatprep.subr.bf16.mxu0 0
        %252 = vmatpush1.bf16.xpose.msra.mxu0 0
        %253 = vmatprep.subr.bf16.mxu0 0
        %254 = vmatpush1.bf16.xpose.msra.mxu0 0
        %255 = vmatprep.subr.bf16.mxu0 0
        %256 = vmatpush1.bf16.xpose.msra.mxu0 0
        %257 = vmatprep.subr.bf16.mxu0 0
        %258 = vmatpush1.bf16.xpose.msra.mxu0 0
        %259 = vmatprep.subr.bf16.mxu0 0
        %260 = vmatpush1.bf16.xpose.msra.mxu0 0
        %261 = vmatprep.subr.bf16.mxu0 0
        %262 = vmatpush1.bf16.xpose.msra.mxu0 0
        %263 = vmatprep.subr.bf16.mxu0 0
        %264 = vmatpush1.bf16.xpose.msra.mxu0 0
        %265 = vmatprep.subr.bf16.mxu0 0
        %266 = vmatpush1.bf16.xpose.msra.mxu0 0
        %267 = vmatprep.mubr.bf16.mxu0 0
        %268 = vmatmul.mubr.bf16.gmra.mrb[0].mxu0 %v230
        %v269 = vpop.f32.mrb[0].mxu0
        %v270 = vadd.f32 0.0, %v269
        %v271 = vpop.f32.mrb[0].mxu0
        %v272 = vpop.f32.mrb[0].mxu0
        %v273 = vpop.f32.mrb[0].mxu0
        %274 = vdwg.mxu0
        %vm275 = vcmask 64512
        %276 = vst.msk [vmem:[%s224] sm:$0xff] %vm275, %v270
        %s277 = sand.u32 %s109, 1
        %s278 = scalar_lea.sflag [#allocation4], %s277
        %s279 = sand.u32 %s109, 1
        %s280 = smul.addr %s279, 8
        %s281 = scalar_lea.vmem [#allocation7], %s280
        // Predicated region
        $region37: #{tpu_custom_call.1} parent=27 // pred_check
          %p282 = pneg %p119
        $region38: #{tpu_custom_call.1} parent=27 // pred_check_branch
          %284 = sbr.rel (%p282) target = $region40
        $region39: #{tpu_custom_call.1} parent=27 // pred_region
          %s286 = ssub.s32 128, 128
          %287 = vsyncadd %s278, %s286
          %s288 = sadd.s32 %s29, %s28
          %s289 = sadd.s32 %s288, %s27
          %s290 = smul.addr %s289, 128
          %s291 = scalar_lea.hbm %s2, %s290
          %s293 = sshll.u32 %s281, 4
          %s294 = int_to_ptr.vmem [resolvable:$true] %s293
          %296 = dma.vmem_to_hbm [thread:$0]  %s294, 128, %s291, %s278
        $region40: #{tpu_custom_call.1} parent=27 // pred_fallthru
          _
      $region28: #{tpu_custom_call.1} parent=5 // pred_fallthru
        _
      %p297 = scmp.le.s32.totalorder 2, %s17
      // Predicated region
      $region41: #{tpu_custom_call.1} parent=5 // pred_check
        %p298 = pneg %p297
      $region42: #{tpu_custom_call.1} parent=5 // pred_check_branch
        %300 = sbr.rel (%p298) target = $region44
      $region43: #{tpu_custom_call.1} parent=5 // pred_region
        %s301 = ssub.s32 %s17, 2
        // Predicated region
        $region45: #{tpu_custom_call.1} parent=43 // pred_check
          %p302 = pneg %p125
        $region46: #{tpu_custom_call.1} parent=43 // pred_check_branch
          %304 = sbr.rel (%p302) target = $region48
        $region47: #{tpu_custom_call.1} parent=43 // pred_region
          %s305 = sand.u32 %s110, 1
          %s306 = scalar_lea.sflag [#allocation4], %s305
          %s307 = sand.u32 %s110, 1
          %s308 = smul.addr %s307, 8
          %s309 = scalar_lea.vmem [#allocation7], %s308
          %310 = dma.done %s306, 128
        $region48: #{tpu_custom_call.1} parent=43 // pred_fallthru
          _
      $region44: #{tpu_custom_call.1} parent=5 // pred_fallthru
        _
    $region6: #{tpu_custom_call.1} parent=1 // loop_footer
      %s21 = sadd.s32 1, %s17
    $region7: #{tpu_custom_call.1} parent=1 // loop_footer_branch
      %16 = sbr.rel target = $region3
    $region8: #{tpu_custom_call.1} parent=1 // loop_exit
      _
    %311 = vsyncpa [#allocation3], 1
    %s312 = scalar_lea.sflag [#allocation3], 1
    %313 = vsyncpa %s312, 1
    %314 = vsyncpa [#allocation6], 1
    %s315 = scalar_lea.sflag [#allocation6], 1
    %316 = vsyncpa %s315, 1
    %317 = vsyncpa [#allocation4], 1
    %s318 = scalar_lea.sflag [#allocation4], 1
    %319 = vsyncpa %s318, 1

</llo_original>
